<compile_context>
chip_gen: v7x
topology: tpu7x:2x2x1
jax: 0.10.0
libtpu: 0.0.40
codegen_flags: <defaults>
</compile_context>

<pallas_src>
import jax
import jax.numpy as jnp
from jax.experimental import pallas as pl
from jax.experimental.pallas import tpu as pltpu


def _round_up(a, b):
    return -(-a // b) * b


def _vmem_budget_bytes():
    """Generation-aware VMEM budget: ~3/4 of physical per-core capacity."""
    try:
        cap = int(pltpu.get_tpu_info().vmem_capacity_bytes)
    except Exception:
        cap = 64 << 20          # conservative fallback (v7x physical per TC)
    return (cap * 3) // 4


def _resample_matmul_kernel(x_ref, mt_ref, o_ref, acc_ref):
    """One (tm, tn, tk) tile of  out[M, HWn] = x[M, HWk] @ Mt[HWk, HWn].

    The batch-invariant one-hot bilinear interpolation matrix Mt is built in
    the wrapper, so the kernel body is a pure MXU streaming matmul with an
    f32 VMEM accumulator (no VPU one-hot build, no spilled temporaries).
    """
    @pl.when(pl.program_id(2) == 0)
    def _():
        acc_ref[...] = jnp.zeros_like(acc_ref)

    acc_ref[...] += jnp.dot(x_ref[...], mt_ref[...],
                            preferred_element_type=jnp.float32)

    @pl.when(pl.program_id(2) == pl.num_programs(2) - 1)
    def _():
        o_ref[...] = acc_ref[...].astype(o_ref.dtype)


def flow_gradient_reg_forward(x, flow=None, *, compute_dtype=jnp.bfloat16):
    """Pallas implementation of FlowGradientReg.forward (NCHW input).

    `flow` is an optional flow field of shape (H, W, 2) shared across the
    batch (the module's forward always uses a zero flow, the default).
    """
    N, C, H, W = x.shape
    HW = H * W
    M = N * C
    if flow is not None:
        # Per-batch flow is not supported by the batch-folded formulation.
        assert flow.shape == (H, W, 2), (
            f"flow must be batch-shared with shape {(H, W, 2)}, got {flow.shape}")

    # ---- batch-invariant coordinate math (wrapper-side, f32) ----
    # identity affine grid, align_corners=True (F.affine_grid with eye theta)
    ys = jnp.linspace(-1.0, 1.0, H, dtype=jnp.float32)
    xs = jnp.linspace(-1.0, 1.0, W, dtype=jnp.float32)
    gy = jnp.broadcast_to(ys[:, None], (H, W))
    gx = jnp.broadcast_to(xs[None, :], (H, W))
    if flow is not None:
        gy = gy + flow[..., 1].astype(jnp.float32)
        gx = gx + flow[..., 0].astype(jnp.float32)
    gy = gy.reshape(HW)
    gx = gx.reshape(HW)

    i = (H - 1) * (gy + 1.0) * 0.5
    j = (W - 1) * (gx + 1.0) * 0.5
    i1 = jnp.clip(jnp.floor(i), 0.0, float(H - 1))
    i2 = jnp.clip(i1 + 1.0, 0.0, float(H - 1))
    j1 = jnp.clip(jnp.floor(j), 0.0, float(W - 1))
    j2 = jnp.clip(j1 + 1.0, 0.0, float(W - 1))
    di = i - i1
    dj = j - j1

    idx = jnp.stack([i1 * W + j1, i1 * W + j2,
                     i2 * W + j1, i2 * W + j2]).astype(jnp.int32)      # [4, HW]
    wts = jnp.stack([(1.0 - di) * (1.0 - dj), (1.0 - di) * dj,
                     di * (1.0 - dj), di * dj]).astype(jnp.float32)    # [4, HW]

    # ---- hoisted one-hot interpolation matrix Mt[HW, HW] (batch-invariant) ----
    cols = jnp.arange(HW, dtype=jnp.int32)
    mt = jnp.zeros((HW, HW), jnp.float32)
    for c in range(4):
        mt = mt.at[idx[c], cols].add(wts[c])
    mt = mt.astype(compute_dtype)

    # ---- tile sizes under a generation-aware VMEM budget ----
    itemsize = jnp.dtype(compute_dtype).itemsize
    out_itemsize = jnp.dtype(x.dtype).itemsize
    sub = 16 if itemsize < 4 else 8                 # sublane multiple per dtype
    tm = min(256, _round_up(M, sub))
    hw128 = _round_up(HW, 128)
    tn = min(2048, hw128)
    tk = min(2048, hw128)

    budget = _vmem_budget_bytes()

    def footprint(tm_, tn_, tk_):
        return (2 * tm_ * tk_ * itemsize            # x tile (double-buffered)
                + 2 * tk_ * tn_ * itemsize          # Mt tile (double-buffered)
                + 2 * tm_ * tn_ * out_itemsize      # out tile (double-buffered)
                + tm_ * tn_ * 4)                    # f32 accumulator scratch

    while footprint(tm, tn, tk) > budget and max(tn, tk) > 128:
        if tn >= tk:
            tn = max(128, _round_up(tn // 2, 128))
        else:
            tk = max(128, _round_up(tk // 2, 128))

    need = footprint(tm, tn, tk)
    vmem_limit = None
    if need > (12 << 20):                            # above v5e's scoped default
        vmem_limit = int(min(budget, max(need + (8 << 20), 32 << 20)))

    Mp = _round_up(M, tm)
    HWk = _round_up(HW, tk)
    HWn = _round_up(HW, tn)

    # Fold batch into the MXU M dimension; no f32 staging of x.
    v = x.reshape(M, HW).astype(compute_dtype)
    if Mp != M or HWk != HW:
        v = jnp.pad(v, ((0, Mp - M), (0, HWk - HW)))
    if HWk != HW or HWn != HW:
        mt = jnp.pad(mt, ((0, HWk - HW), (0, HWn - HW)))

    grid = (Mp // tm, HWn // tn, HWk // tk)
    out = pl.pallas_call(
        _resample_matmul_kernel,
        out_shape=jax.ShapeDtypeStruct((Mp, HWn), x.dtype),
        grid_spec=pltpu.PrefetchScalarGridSpec(
            num_scalar_prefetch=0,
            grid=grid,
            in_specs=[
                pl.BlockSpec((tm, tk), lambda m, n, k: (m, k)),
                pl.BlockSpec((tk, tn), lambda m, n, k: (k, n)),
            ],
            out_specs=pl.BlockSpec((tm, tn), lambda m, n, k: (m, n)),
            scratch_shapes=[pltpu.VMEM((tm, tn), jnp.float32)],
        ),
        compiler_params=pltpu.CompilerParams(
            dimension_semantics=("parallel", "parallel", "arbitrary"),
            vmem_limit_bytes=vmem_limit,
        ),
    )(v, mt)

    return out[:M, :HW].reshape(N, C, H, W)


# TODO(synk): `calculate()` (grad of a loss w.r.t. flow_matrx) is an autograd
# call, not a forward-pass op; it would be expressed with jax.grad outside the
# kernel and is not part of this forward implementation.


def _reference_forward(x, flow=None):
    """Pure-JAX mirror of the torch gather-based grid_sample, for verification."""
    N, C, H, W = x.shape
    HW = H * W
    ys = jnp.linspace(-1.0, 1.0, H, dtype=jnp.float32)
    xs = jnp.linspace(-1.0, 1.0, W, dtype=jnp.float32)
    gy = jnp.broadcast_to(ys[:, None], (H, W))
    gx = jnp.broadcast_to(xs[None, :], (H, W))
    if flow is not None:
        gy = gy + flow[..., 1]
        gx = gx + flow[..., 0]
    gy = gy.reshape(HW)
    gx = gx.reshape(HW)
    i = (H - 1) * (gy + 1.0) / 2.0
    j = (W - 1) * (gx + 1.0) / 2.0
    i1 = jnp.clip(jnp.floor(i), 0, H - 1)
    i2 = jnp.clip(i1 + 1, 0, H - 1)
    j1 = jnp.clip(jnp.floor(j), 0, W - 1)
    j2 = jnp.clip(j1 + 1, 0, W - 1)
    di = i - i1
    dj = j - j1
    v = x.astype(jnp.float32).reshape(N, C, HW)

    def gather(flat_idx):
        flat_idx = flat_idx.astype(jnp.int32)[None, None, :]
        flat_idx = jnp.broadcast_to(flat_idx, (N, C, HW))
        return jnp.take_along_axis(v, flat_idx, axis=-1)

    q11 = gather(i1 * W + j1)
    q12 = gather(i1 * W + j2)
    q21 = gather(i2 * W + j1)
    q22 = gather(i2 * W + j2)
    qi1 = q11 * (1 - di) + q21 * di
    qi2 = q12 * (1 - di) + q22 * di
    qij = qi1 * (1 - dj) + qi2 * dj
    return qij.reshape(N, C, H, W)


if __name__ == "__main__":
    key = jax.random.PRNGKey(0)
    kx, kf = jax.random.split(key)
    N, C, H, W = 2, 4, 16, 16
    x = jax.random.uniform(kx, (N, C, H, W), dtype=jnp.float32)

    z_ref = _reference_forward(x)

    # f32-operand path: exact vs. reference and vs. identity (zero flow).
    z32 = jax.block_until_ready(
        flow_gradient_reg_forward(x, compute_dtype=jnp.float32))
    assert z32.shape == x.shape
    assert jnp.allclose(z32, z_ref, atol=1e-5, rtol=1e-5), "f32 mismatch vs reference"
    assert jnp.allclose(z32, x, atol=1e-5, rtol=1e-5), "f32 mismatch vs identity"

    # default bf16-operand / f32-accumulate path (native MXU input dtype).
    zbf = jax.block_until_ready(flow_gradient_reg_forward(x))
    assert jnp.allclose(zbf, z_ref, atol=1e-2, rtol=1e-2), "bf16 mismatch vs reference"

    # nonzero (batch-shared) flow: non-trivial bilinear weights + clipping.
    flow = 0.1 * jax.random.normal(kf, (H, W, 2), dtype=jnp.float32)
    zf_ref = _reference_forward(x, flow=flow)
    zf32 = jax.block_until_ready(
        flow_gradient_reg_forward(x, flow=flow, compute_dtype=jnp.float32))
    assert jnp.allclose(zf32, zf_ref, atol=1e-5, rtol=1e-5), "f32 flow mismatch"
    zfbf = jax.block_until_ready(flow_gradient_reg_forward(x, flow=flow))
    assert jnp.allclose(zfbf, zf_ref, atol=1e-2, rtol=1e-2), "bf16 flow mismatch"

    print("KERNEL_OK")
</pallas_src>

<mosaic_0001>
module attributes {stable_mosaic.version = 11 : i64} {
  func.func @_resample_matmul_kernel(%arg0: i32, %arg1: i32, %arg2: i32, %arg3: memref<8x256xf32, #tpu.memory_space<vmem>>, %arg4: memref<256x256xf32, #tpu.memory_space<vmem>>, %arg5: memref<8x256xf32, #tpu.memory_space<vmem>>, %arg6: memref<8x256xf32, #tpu.memory_space<vmem>>) attributes {dimension_semantics = [#tpu.dimension_semantics<parallel>, #tpu.dimension_semantics<parallel>, #tpu.dimension_semantics<arbitrary>], iteration_bounds = array<i64: 1, 1, 1>, scalar_prefetch = 0 : i64, scratch_operands = 1 : i64, tpu.core_type = #tpu.core_type<tc>, window_params = [{transform_indices = @transform_0, window_bounds = array<i64: 8, 256>}, {transform_indices = @transform_1, window_bounds = array<i64: 256, 256>}, {transform_indices = @transform_2, window_bounds = array<i64: 8, 256>}]} {
    %c0_i32 = arith.constant 0 : i32
    %0 = arith.cmpi eq, %arg2, %c0_i32 : i32
    %1 = arith.extui %0 : i1 to i32
    %c0_i32_0 = arith.constant 0 : i32
    %2 = arith.cmpi ne, %1, %c0_i32_0 : i32
    scf.if %2 {
      %cst_10 = arith.constant 0.000000e+00 : f32
      %12 = vector.broadcast %cst_10 : f32 to vector<8x256xf32>
      %c0_11 = arith.constant 0 : index
      %c0_12 = arith.constant 0 : index
      %13 = vector.load %arg6[%c0_11, %c0_12] : memref<8x256xf32, #tpu.memory_space<vmem>>, vector<8x256xf32>
      tpu.vector_store %arg6[%c0_11, %c0_12], %12 {strides = array<i32>} : memref<8x256xf32, #tpu.memory_space<vmem>>, vector<8x256xf32>,
    } else {
    }
    %c0 = arith.constant 0 : index
    %c0_1 = arith.constant 0 : index
    %3 = vector.load %arg6[%c0, %c0_1] : memref<8x256xf32, #tpu.memory_space<vmem>>, vector<8x256xf32>
    %c0_2 = arith.constant 0 : index
    %c0_3 = arith.constant 0 : index
    %4 = vector.load %arg3[%c0_2, %c0_3] : memref<8x256xf32, #tpu.memory_space<vmem>>, vector<8x256xf32>
    %c0_4 = arith.constant 0 : index
    %c0_5 = arith.constant 0 : index
    %5 = vector.load %arg4[%c0_4, %c0_5] : memref<256x256xf32, #tpu.memory_space<vmem>>, vector<256x256xf32>
    %cst = arith.constant dense<0.000000e+00> : vector<8x256xf32>
    %6 = tpu.matmul %4, %5, %cst {dimension_numbers = #tpu.dot_dimension_numbers<[1], [0], [0], [1], [0, 0, 1, 1], [], []>} : vector<8x256xf32>, vector<256x256xf32>, vector<8x256xf32> -> vector<8x256xf32>
    %7 = arith.addf %3, %6 : vector<8x256xf32>
    %c0_6 = arith.constant 0 : index
    %c0_7 = arith.constant 0 : index
    %8 = vector.load %arg6[%c0_6, %c0_7] : memref<8x256xf32, #tpu.memory_space<vmem>>, vector<8x256xf32>
    tpu.vector_store %arg6[%c0_6, %c0_7], %7 {strides = array<i32>} : memref<8x256xf32, #tpu.memory_space<vmem>>, vector<8x256xf32>,
    %c0_i32_8 = arith.constant 0 : i32
    %9 = arith.cmpi eq, %arg2, %c0_i32_8 : i32
    %10 = arith.extui %9 : i1 to i32
    %c0_i32_9 = arith.constant 0 : i32
    %11 = arith.cmpi ne, %10, %c0_i32_9 : i32
    scf.if %11 {
      %c0_10 = arith.constant 0 : index
      %c0_11 = arith.constant 0 : index
      %12 = vector.load %arg6[%c0_10, %c0_11] : memref<8x256xf32, #tpu.memory_space<vmem>>, vector<8x256xf32>
      %c0_12 = arith.constant 0 : index
      %c0_13 = arith.constant 0 : index
      %13 = vector.load %arg5[%c0_12, %c0_13] : memref<8x256xf32, #tpu.memory_space<vmem>>, vector<8x256xf32>
      tpu.vector_store %arg5[%c0_12, %c0_13], %12 {strides = array<i32>} : memref<8x256xf32, #tpu.memory_space<vmem>>, vector<8x256xf32>,
    } else {
    }
    return
  }
  func.func @transform_0(%arg0: i32, %arg1: i32, %arg2: i32) -> (i32, i32) {
    %c0_i32 = arith.constant 0 : i32
    return %arg0, %arg2 : i32, i32
  }
  func.func @transform_1(%arg0: i32, %arg1: i32, %arg2: i32) -> (i32, i32) {
    %c0_i32 = arith.constant 0 : i32
    return %arg2, %arg1 : i32, i32
  }
  func.func @transform_2(%arg0: i32, %arg1: i32, %arg2: i32) -> (i32, i32) {
    %c0_i32 = arith.constant 0 : i32
    return %arg0, %arg1 : i32, i32
  }
}

</mosaic_0001>

<llo_original>
// kernel: tpu_custom_call.1
$region0: #{tpu_custom_call.1}
  #allocation0 [shape = 'u32[]', space=smem, size = 0x4, offset = 0x4, fixed_abs, tag = 'smem constant byte address 0x4 - core index']
  #allocation1 [shape = 'u32[144,128]{1,0:T(1,128)}', space=vmem, size = 0x12000, scoped, tag = 'internal scratch']
  #allocation2 [shape = 'f32[8,256]{1,0:T(8,128)}', space=vmem, size = 0x2000, scoped, tag = 'scratch operand']
  %s0 = inlined_call_operand.hbm [shape: f32[8,256], index: 0, kind: input, shape index: {}]
  %s1 = inlined_call_operand.hbm [shape: f32[256,256], index: 1, kind: input, shape index: {}]
  %s2 = inlined_call_operand.hbm [shape: f32[8,256], index: 2, kind: output, shape index: {}]
  %s3 = sld [smem:[#allocation0]]
  $region34: #{tpu_custom_call.1} parent=0
    _
  %s5 = ssub.s32 1, %s3
  %s6 = scalar_select 0, %s5, %s3
  $region1: #{tpu_custom_call.1} parent=0
    #allocation3 [shape = 'u8[8192]{0}', space=vmem, size = 0x2000, scoped, tag = 'input window, operand 0, single buffered']
    #allocation4 [shape = 's32[1]{0}', space=sflag, size = 0x4, scoped, tag = 'scoped memory for tpu_custom_call.1']
    #allocation5 [shape = 's32[1]{0}', space=sflag, size = 0x4, scoped, tag = 'scoped memory for tpu_custom_call.1']
    #allocation6 [shape = 'u8[262144]{0}', space=vmem, size = 0x40000, scoped, tag = 'input window, operand 1, single buffered']
    #allocation7 [shape = 's32[1]{0}', space=sflag, size = 0x4, scoped, tag = 'scoped memory for tpu_custom_call.1']
    #allocation8 [shape = 'u8[8192]{0}', space=vmem, size = 0x2000, scoped, tag = 'output window, operand 0, single buffered']
    %7 = vsyncpa [#allocation4], 0
    %8 = vsyncpa [#allocation7], 0
    %9 = vsyncpa [#allocation5], 0
    // Predicated region
    $region2: #{tpu_custom_call.1} parent=1 // pred_check
      _
    $region3: #{tpu_custom_call.1} parent=1 // pred_check_branch
      %11 = sbr.rel (0) target = $region5
    $region4: #{tpu_custom_call.1} parent=1 // pred_region
      %s13 = ssub.s32 256, 256
      %14 = vsyncadd [#allocation4], %s13
      %s16 = sshll.u32 [#allocation3], 4
      %s17 = int_to_ptr.vmem [resolvable:$true] %s16
      %19 = dma.hbm_to_vmem [thread:$0]  %s0, 256, %s17, [#allocation4]
    $region5: #{tpu_custom_call.1} parent=1 // pred_fallthru
      _
    // Predicated region
    $region6: #{tpu_custom_call.1} parent=1 // pred_check
      _
    $region7: #{tpu_custom_call.1} parent=1 // pred_check_branch
      %21 = sbr.rel (0) target = $region9
    $region8: #{tpu_custom_call.1} parent=1 // pred_region
      %s23 = ssub.s32 8192, 8192
      %24 = vsyncadd [#allocation7], %s23
      %s25 = sshll.u32 [#allocation6], 4
      %s26 = int_to_ptr.vmem [resolvable:$true] %s25
      %31 = dma.hbm_to_vmem [thread:$0]  %s1, 8192, %s26, [#allocation7], 256, 256, 16
    $region9: #{tpu_custom_call.1} parent=1 // pred_fallthru
      _
    // Predicated region
    $region10: #{tpu_custom_call.1} parent=1 // pred_check
      _
    $region11: #{tpu_custom_call.1} parent=1 // pred_check_branch
      %33 = sbr.rel (0) target = $region13
    $region12: #{tpu_custom_call.1} parent=1 // pred_region
      %34 = dma.done [#allocation4], 256
    $region13: #{tpu_custom_call.1} parent=1 // pred_fallthru
      _
    // Predicated region
    $region14: #{tpu_custom_call.1} parent=1 // pred_check
      _
    $region15: #{tpu_custom_call.1} parent=1 // pred_check_branch
      %36 = sbr.rel (0) target = $region17
    $region16: #{tpu_custom_call.1} parent=1 // pred_region
      %37 = dma.done [#allocation7], 8192
    $region17: #{tpu_custom_call.1} parent=1 // pred_fallthru
      _
    %p38 = scmp.eq.s32.totalorder 0, 0
    // Predicated region
    $region18: #{tpu_custom_call.1} parent=1 // pred_check
      %p39 = pneg %p38
    $region19: #{tpu_custom_call.1} parent=1 // pred_check_branch
      %41 = sbr.rel (%p39) target = $region21
    $region20: #{tpu_custom_call.1} parent=1 // pred_region
      %42 = vst [vmem:[#allocation2] sm:$0xff] 0.0
      %43 = vst [vmem:[#allocation2 + $0x8] sm:$0xff] 0.0
    $region21: #{tpu_custom_call.1} parent=1 // pred_fallthru
      _
    %v44 = vld [vmem:[#allocation2] sm:$0xff]
    %v45 = vld [vmem:[#allocation2 + $0x8] sm:$0xff]
    %v46 = vld [vmem:[#allocation3] sm:$0xff]
    %v47 = vld [vmem:[#allocation3 + $0x8] sm:$0xff]
    %v48 = vld [vmem:[#allocation6] sm:$0xff]
    %v49 = vld [vmem:[#allocation6 + $0x8] sm:$0xff]
    %v50 = vld [vmem:[#allocation6 + $0x10] sm:$0xff]
    %v51 = vld [vmem:[#allocation6 + $0x18] sm:$0xff]
    %v52 = vld [vmem:[#allocation6 + $0x20] sm:$0xff]
    %v53 = vld [vmem:[#allocation6 + $0x28] sm:$0xff]
    %v54 = vld [vmem:[#allocation6 + $0x30] sm:$0xff]
    %v55 = vld [vmem:[#allocation6 + $0x38] sm:$0xff]
    %v56 = vld [vmem:[#allocation6 + $0x40] sm:$0xff]
    %v57 = vld [vmem:[#allocation6 + $0x48] sm:$0xff]
    %v58 = vld [vmem:[#allocation6 + $0x50] sm:$0xff]
    %v59 = vld [vmem:[#allocation6 + $0x58] sm:$0xff]
    %v60 = vld [vmem:[#allocation6 + $0x60] sm:$0xff]
    %v61 = vld [vmem:[#allocation6 + $0x68] sm:$0xff]
    %v62 = vld [vmem:[#allocation6 + $0x70] sm:$0xff]
    %v63 = vld [vmem:[#allocation6 + $0x78] sm:$0xff]
    %v64 = vld [vmem:[#allocation6 + $0x80] sm:$0xff]
    %v65 = vld [vmem:[#allocation6 + $0x88] sm:$0xff]
    %v66 = vld [vmem:[#allocation6 + $0x90] sm:$0xff]
    %v67 = vld [vmem:[#allocation6 + $0x98] sm:$0xff]
    %v68 = vld [vmem:[#allocation6 + $0xa0] sm:$0xff]
    %v69 = vld [vmem:[#allocation6 + $0xa8] sm:$0xff]
    %v70 = vld [vmem:[#allocation6 + $0xb0] sm:$0xff]
    %v71 = vld [vmem:[#allocation6 + $0xb8] sm:$0xff]
    %v72 = vld [vmem:[#allocation6 + $0xc0] sm:$0xff]
    %v73 = vld [vmem:[#allocation6 + $0xc8] sm:$0xff]
    %v74 = vld [vmem:[#allocation6 + $0xd0] sm:$0xff]
    %v75 = vld [vmem:[#allocation6 + $0xd8] sm:$0xff]
    %v76 = vld [vmem:[#allocation6 + $0xe0] sm:$0xff]
    %v77 = vld [vmem:[#allocation6 + $0xe8] sm:$0xff]
    %v78 = vld [vmem:[#allocation6 + $0xf0] sm:$0xff]
    %v79 = vld [vmem:[#allocation6 + $0xf8] sm:$0xff]
    %v80 = vld [vmem:[#allocation6 + $0x100] sm:$0xff]
    %v81 = vld [vmem:[#allocation6 + $0x108] sm:$0xff]
    %v82 = vld [vmem:[#allocation6 + $0x110] sm:$0xff]
    %v83 = vld [vmem:[#allocation6 + $0x118] sm:$0xff]
    %v84 = vld [vmem:[#allocation6 + $0x120] sm:$0xff]
    %v85 = vld [vmem:[#allocation6 + $0x128] sm:$0xff]
    %v86 = vld [vmem:[#allocation6 + $0x130] sm:$0xff]
    %v87 = vld [vmem:[#allocation6 + $0x138] sm:$0xff]
    %v88 = vld [vmem:[#allocation6 + $0x140] sm:$0xff]
    %v89 = vld [vmem:[#allocation6 + $0x148] sm:$0xff]
    %v90 = vld [vmem:[#allocation6 + $0x150] sm:$0xff]
    %v91 = vld [vmem:[#allocation6 + $0x158] sm:$0xff]
    %v92 = vld [vmem:[#allocation6 + $0x160] sm:$0xff]
    %v93 = vld [vmem:[#allocation6 + $0x168] sm:$0xff]
    %v94 = vld [vmem:[#allocation6 + $0x170] sm:$0xff]
    %v95 = vld [vmem:[#allocation6 + $0x178] sm:$0xff]
    %v96 = vld [vmem:[#allocation6 + $0x180] sm:$0xff]
    %v97 = vld [vmem:[#allocation6 + $0x188] sm:$0xff]
    %v98 = vld [vmem:[#allocation6 + $0x190] sm:$0xff]
    %v99 = vld [vmem:[#allocation6 + $0x198] sm:$0xff]
    %v100 = vld [vmem:[#allocation6 + $0x1a0] sm:$0xff]
    %v101 = vld [vmem:[#allocation6 + $0x1a8] sm:$0xff]
    %v102 = vld [vmem:[#allocation6 + $0x1b0] sm:$0xff]
    %v103 = vld [vmem:[#allocation6 + $0x1b8] sm:$0xff]
    %v104 = vld [vmem:[#allocation6 + $0x1c0] sm:$0xff]
    %v105 = vld [vmem:[#allocation6 + $0x1c8] sm:$0xff]
    %v106 = vld [vmem:[#allocation6 + $0x1d0] sm:$0xff]
    %v107 = vld [vmem:[#allocation6 + $0x1d8] sm:$0xff]
    %v108 = vld [vmem:[#allocation6 + $0x1e0] sm:$0xff]
    %v109 = vld [vmem:[#allocation6 + $0x1e8] sm:$0xff]
    %v110 = vld [vmem:[#allocation6 + $0x1f0] sm:$0xff]
    %v111 = vld [vmem:[#allocation6 + $0x1f8] sm:$0xff]
    %112 = vmatprep.subr.mxu0 %v49
    %113 = vmatpush1.msra.mxu0 %v48
    %114 = vmatprep.subr.mxu0 %v51
    %115 = vmatpush1.msra.mxu0 %v50
    %116 = vmatprep.subr.mxu0 %v53
    %117 = vmatpush1.msra.mxu0 %v52
    %118 = vmatprep.subr.mxu0 %v55
    %119 = vmatpush1.msra.mxu0 %v54
    %120 = vmatprep.subr.mxu0 %v57
    %121 = vmatpush1.msra.mxu0 %v56
    %122 = vmatprep.subr.mxu0 %v59
    %123 = vmatpush1.msra.mxu0 %v58
    %124 = vmatprep.subr.mxu0 %v61
    %125 = vmatpush1.msra.mxu0 %v60
    %126 = vmatprep.subr.mxu0 %v63
    %127 = vmatpush1.msra.mxu0 %v62
    %128 = vmatprep.subr.mxu0 %v65
    %129 = vmatpush1.msra.mxu0 %v64
    %130 = vmatprep.subr.mxu0 %v67
    %131 = vmatpush1.msra.mxu0 %v66
    %132 = vmatprep.subr.mxu0 %v69
    %133 = vmatpush1.msra.mxu0 %v68
    %134 = vmatprep.subr.mxu0 %v71
    %135 = vmatpush1.msra.mxu0 %v70
    %136 = vmatprep.subr.mxu0 %v73
    %137 = vmatpush1.msra.mxu0 %v72
    %138 = vmatprep.subr.mxu0 %v75
    %139 = vmatpush1.msra.mxu0 %v74
    %140 = vmatprep.subr.mxu0 %v77
    %141 = vmatpush1.msra.mxu0 %v76
    %142 = vmatprep.subr.mxu0 %v79
    %143 = vmatpush1.msra.mxu0 %v78
    %144 = vmatprep.subr.mxu0 %v81
    %145 = vmatpush1.msra.mxu0 %v80
    %146 = vmatprep.subr.mxu0 %v83
    %147 = vmatpush1.msra.mxu0 %v82
    %148 = vmatprep.subr.mxu0 %v85
    %149 = vmatpush1.msra.mxu0 %v84
    %150 = vmatprep.subr.mxu0 %v87
    %151 = vmatpush1.msra.mxu0 %v86
    %152 = vmatprep.subr.mxu0 %v89
    %153 = vmatpush1.msra.mxu0 %v88
    %154 = vmatprep.subr.mxu0 %v91
    %155 = vmatpush1.msra.mxu0 %v90
    %156 = vmatprep.subr.mxu0 %v93
    %157 = vmatpush1.msra.mxu0 %v92
    %158 = vmatprep.subr.mxu0 %v95
    %159 = vmatpush1.msra.mxu0 %v94
    %160 = vmatprep.subr.mxu0 %v97
    %161 = vmatpush1.msra.mxu0 %v96
    %162 = vmatprep.subr.mxu0 %v99
    %163 = vmatpush1.msra.mxu0 %v98
    %164 = vmatprep.subr.mxu0 %v101
    %165 = vmatpush1.msra.mxu0 %v100
    %166 = vmatprep.subr.mxu0 %v103
    %167 = vmatpush1.msra.mxu0 %v102
    %168 = vmatprep.subr.mxu0 %v105
    %169 = vmatpush1.msra.mxu0 %v104
    %170 = vmatprep.subr.mxu0 %v107
    %171 = vmatpush1.msra.mxu0 %v106
    %172 = vmatprep.subr.mxu0 %v109
    %173 = vmatpush1.msra.mxu0 %v108
    %174 = vmatprep.subr.mxu0 %v111
    %175 = vmatpush1.msra.mxu0 %v110
    %176 = vmatprep.mubr.f32.mxu0 %v47
    %177 = vmatmul.mubr.f32.gmra.mrb[0].mxu0 %v46
    %v178 = vpop.f32.mrb[0].mxu0
    %v179 = vadd.f32 0.0, %v178
    %v180 = vpop.f32.mrb[0].mxu0
    %v181 = vadd.f32 0.0, %v180
    %182 = vdwg.mxu0
    %v183 = vadd.f32 %v44, %v179
    %v184 = vadd.f32 %v45, %v181
    %185 = vst [vmem:[#allocation2] sm:$0xff] %v183
    %186 = vst [vmem:[#allocation2 + $0x8] sm:$0xff] %v184
    // Predicated region
    $region22: #{tpu_custom_call.1} parent=1 // pred_check
      %p187 = pneg %p38
    $region23: #{tpu_custom_call.1} parent=1 // pred_check_branch
      %189 = sbr.rel (%p187) target = $region25
    $region24: #{tpu_custom_call.1} parent=1 // pred_region
      %v190 = vld [vmem:[#allocation2] sm:$0xff]
      %v191 = vld [vmem:[#allocation2 + $0x8] sm:$0xff]
      %192 = vst [vmem:[#allocation8] sm:$0xff] %v190
      %193 = vst [vmem:[#allocation8 + $0x8] sm:$0xff] %v191
    $region25: #{tpu_custom_call.1} parent=1 // pred_fallthru
      _
    // Predicated region
    $region26: #{tpu_custom_call.1} parent=1 // pred_check
      _
    $region27: #{tpu_custom_call.1} parent=1 // pred_check_branch
      %195 = sbr.rel (0) target = $region29
    $region28: #{tpu_custom_call.1} parent=1 // pred_region
      %s197 = ssub.s32 256, 256
      %198 = vsyncadd [#allocation5], %s197
      %s200 = sshll.u32 [#allocation8], 4
      %s201 = int_to_ptr.vmem [resolvable:$true] %s200
      %203 = dma.vmem_to_hbm [thread:$0]  %s201, 256, %s2, [#allocation5]
    $region29: #{tpu_custom_call.1} parent=1 // pred_fallthru
      _
    // Predicated region
    $region30: #{tpu_custom_call.1} parent=1 // pred_check
      _
    $region31: #{tpu_custom_call.1} parent=1 // pred_check_branch
      %205 = sbr.rel (0) target = $region33
    $region32: #{tpu_custom_call.1} parent=1 // pred_region
      %206 = dma.done [#allocation5], 256
    $region33: #{tpu_custom_call.1} parent=1 // pred_fallthru
      _
    %207 = vsyncpa [#allocation4], 1
    %208 = vsyncpa [#allocation7], 1
    %209 = vsyncpa [#allocation5], 1

</llo_original>
